<compile_context>
chip_gen: v7x
topology: tpu7x:2x2x1
jax: 0.10.0
libtpu: 0.0.40
codegen_flags: <defaults>
</compile_context>

<pallas_src>
import functools

import jax
import jax.numpy as jnp
import numpy as np
from jax.experimental import pallas as pl
from jax.experimental.pallas import tpu as pltpu


def _round_up(x, m):
    return ((x + m - 1) // m) * m


def _log_sigmoid(x):
    # Numerically stable log-sigmoid: min(x, 0) - log1p(exp(-|x|)).
    return jnp.minimum(x, 0.0) - jnp.log1p(jnp.exp(-jnp.abs(x)))


def skipgram_loss_kernel(idx_ref, u_tab_ref, v_tab_ref, loss_ref, *,
                         num_neg, tile_b, batch, padded):
    """Per-batch-tile SkipGram loss with an in-kernel (MXU one-hot) gather."""
    b = pl.program_id(1)

    @pl.when(b == 0)
    def _():
        loss_ref[...] = jnp.zeros_like(loss_ref)

    idx = idx_ref[...]                       # (2+K, tb) int32, batch on lanes
    u_tab = u_tab_ref[...]                   # (Dp, Vp) bf16, transposed u-table
    v_tab = v_tab_ref[...]                   # (Dp, Vp) bf16, transposed v-table

    vp = u_tab.shape[1]
    vocab_iota = jax.lax.broadcasted_iota(jnp.int32, (vp, tile_b), 0)

    def one_hot_t(row):                      # (1, tb) int32 -> (Vp, tb) bf16
        return (vocab_iota == row).astype(jnp.float32).astype(jnp.bfloat16)

    u_oh = one_hot_t(idx[0:1, :])
    v_oh = one_hot_t(idx[1:2, :])
    # Multi-hot over the K negatives: sum_k one_hot(n_idx[:, k]).  Counts <= K are
    # exact in bf16, so the MXU "gather" below stays exact for bf16 table values.
    n_mh = (vocab_iota == idx[2:3, :]).astype(jnp.float32)
    for k in range(1, num_neg):
        n_mh = n_mh + (vocab_iota == idx[2 + k:3 + k, :]).astype(jnp.float32)
    n_mh = n_mh.astype(jnp.bfloat16)

    # Fused gather on the (otherwise idle) MXU, transposed so batch lands on lanes:
    #   eu_t[d, b] = u_tab[d, u_idx[b]]   etc.;  nv_t = sum_k v_tab[:, n_idx[:, k]]
    eu_t = jnp.dot(u_tab, u_oh, preferred_element_type=jnp.float32)    # (Dp, tb)
    ev_t = jnp.dot(v_tab, v_oh, preferred_element_type=jnp.float32)    # (Dp, tb)
    nv_t = jnp.dot(v_tab, n_mh, preferred_element_type=jnp.float32)    # (Dp, tb)

    # D-reduction is a cheap sublane reduce; scores stay lane-dense (1, tb) so the
    # transcendentals below run on fully packed lanes.
    pos_score = jnp.sum(eu_t * ev_t, axis=0, keepdims=True)            # (1, tb)
    neg_score = jnp.sum(eu_t * nv_t, axis=0, keepdims=True)            # (1, tb)

    per_row = _log_sigmoid(pos_score) + _log_sigmoid(neg_score)        # (1, tb)

    if padded:  # static flag: only emitted when B was padded up to the tile grid
        tile_idx = pl.program_id(0) * pl.num_programs(1) + b
        col = tile_idx * tile_b + jax.lax.broadcasted_iota(
            jnp.int32, (1, tile_b), 1)
        per_row = jnp.where(col < batch, per_row, 0.0)

    # (1, 1) tile partial, broadcast-accumulated into the full lane-dense
    # (1, 8, 128) output block (unmasked stores).  NOTE: every element of the
    # block carries the SAME partial sum; consumers must read a single element
    # (the wrapper reads [:, 0, 0]) and must never sum over the block.
    loss_ref[...] += jnp.sum(per_row, axis=1, keepdims=True)


def skipgram_loss(u_w, v_w, u_pos, v_pos, v_neg, batch_size, *,
                  tb=2048, num_splits=None, table_dtype=jnp.bfloat16):
    """SkipGram negative-sampling loss (scalar), Pallas hot path.

    tb:           batch tile (multiple of 128, auto-clamped for small batches).
    num_splits:   leading 'parallel' grid axis; defaults to 2 on v7x (dual TC),
                  1 on single-core v5e/v6e.
    table_dtype:  dtype the embedding tables are held in inside VMEM (bf16 is a
                  deliberate choice: halves table traffic / VMEM; all in-kernel
                  math is f32 and the one-hot gather of bf16 values is exact).
    """
    B = int(u_pos.shape[0])
    K = int(v_neg.shape[1])
    V, D = int(u_w.shape[0]), int(u_w.shape[1])

    if num_splits is None:
        num_splits = 1
        try:
            kind = jax.devices()[0].device_kind.lower()
            if "v7" in kind or "7x" in kind:
                num_splits = 2               # dual TensorCore generation
        except Exception:
            pass

    # Batch tile: multiple of 128 (lane dim of the transposed layout), no larger
    # than the rounded-up batch.
    tb = _round_up(max(128, min(int(tb), _round_up(B, 128))), 128)
    Bp = _round_up(B, num_splits * tb)
    tiles_per_split = Bp // (num_splits * tb)
    padded = Bp != B
    pad = Bp - B

    # ---- glue: pack ALL per-row indices into one lane-dense int32 block ----
    # rows = [u, v, n_0 .. n_{K-1}], batch on the minor (lane) axis.
    u_idx = jnp.pad(u_pos.reshape(-1).astype(jnp.int32), (0, pad))
    v_idx = jnp.pad(v_pos.reshape(-1).astype(jnp.int32), (0, pad))
    n_idx = jnp.pad(v_neg.reshape(B, K).astype(jnp.int32), ((0, pad), (0, 0)))
    idx_t = jnp.concatenate([u_idx[:, None], v_idx[:, None], n_idx], axis=1).T  # (2+K, Bp)

    # ---- glue: transposed, vocab-padded tables (VMEM-resident kernel inputs) ----
    Vp = _round_up(V, 128)
    Dp = _round_up(D, 16)
    u_tab_t = jnp.zeros((Dp, Vp), table_dtype).at[:D, :V].set(u_w.T.astype(table_dtype))
    v_tab_t = jnp.zeros((Dp, Vp), table_dtype).at[:D, :V].set(v_w.T.astype(table_dtype))

    kernel = functools.partial(skipgram_loss_kernel, num_neg=K, tile_b=tb,
                               batch=B, padded=padded)

    # VMEM budget from lane/sublane-PADDED block sizes (double-buffered index block,
    # resident tables, output block) plus in-kernel one-hot / gathered temporaries;
    # capped at the ~32 MiB scoped default, safe on v7x's 64 MiB physical VMEM.
    tab_itemsize = jnp.dtype(table_dtype).itemsize
    idx_block = _round_up(2 + K, 8) * tb * 4
    tab_blocks = 2 * 2 * Dp * Vp * tab_itemsize
    temps = 4 * Vp * tb * 4 + 3 * Dp * tb * 4 + 8 * tb * 4
    vmem_limit = int(min(32 << 20,
                         max(16 << 20, 2 * idx_block + tab_blocks + temps + (2 << 20))))

    partials = pl.pallas_call(
        kernel,
        out_shape=jax.ShapeDtypeStruct((num_splits, 8, 128), jnp.float32),
        grid_spec=pltpu.PrefetchScalarGridSpec(
            num_scalar_prefetch=0,
            grid=(num_splits, tiles_per_split),
            in_specs=[
                # single lane-dense index block per tile
                pl.BlockSpec((2 + K, tb), lambda c, b: (0, c * tiles_per_split + b)),
                # tables: constant block index -> stay resident across the grid
                pl.BlockSpec((Dp, Vp), lambda c, b: (0, 0)),
                pl.BlockSpec((Dp, Vp), lambda c, b: (0, 0)),
            ],
            out_specs=pl.BlockSpec((1, 8, 128), lambda c, b: (c, 0, 0)),
        ),
        compiler_params=pltpu.CompilerParams(
            dimension_semantics=("parallel", "arbitrary"),
            vmem_limit_bytes=vmem_limit),
    )(idx_t, u_tab_t, v_tab_t)

    # Per-core partial sums (each split owns a disjoint output block); the -1/batch
    # scale and the cross-core sum happen once, outside the kernel.
    return -jnp.sum(partials[:, 0, 0]) / jnp.float32(batch_size)


if __name__ == "__main__":
    vocab_size = 100
    embedding_dim = 32
    batch_size = 16
    num_neg = 4

    key = jax.random.PRNGKey(0)
    k1, k2, k3, k4, k5 = jax.random.split(key, 5)

    # Deterministic parameter init matching the module shapes.
    # u_embeddings: uniform(-0.5/D, 0.5/D) as in init_emb().
    init_range = 0.5 / embedding_dim
    u_w = jax.random.uniform(k1, (vocab_size, embedding_dim), jnp.float32,
                             minval=-init_range, maxval=init_range)
    # The module inits v_embeddings to zeros (uniform(-0, 0)), which makes every
    # score exactly 0; small random values are used instead so the negative-sampling
    # path is actually exercised numerically.
    v_w = jax.random.uniform(k2, (vocab_size, embedding_dim), jnp.float32,
                             minval=-init_range, maxval=init_range)

    u_pos = jax.random.randint(k3, (batch_size,), 0, vocab_size, dtype=jnp.int32)
    v_pos = jax.random.randint(k4, (batch_size,), 0, vocab_size, dtype=jnp.int32)
    v_neg = jax.random.randint(k5, (batch_size, num_neg), 0, vocab_size,
                               dtype=jnp.int32)

    loss = skipgram_loss(u_w, v_w, u_pos, v_pos, v_neg, batch_size)
    loss = jax.block_until_ready(loss)

    # Pure-JAX reference for correctness.  Tables are bf16-rounded to match the
    # kernel's deliberate bf16 table storage; all math is f32, as in the kernel.
    eu = u_w.astype(jnp.bfloat16).astype(jnp.float32)[u_pos]
    ev = v_w.astype(jnp.bfloat16).astype(jnp.float32)[v_pos]
    nv = v_w.astype(jnp.bfloat16).astype(jnp.float32)[v_neg.reshape(-1)]
    nv = nv.reshape(batch_size, num_neg, embedding_dim)
    pos = jnp.sum(eu * ev, axis=1)
    neg = jnp.sum(nv * eu[:, None, :], axis=(1, 2))
    ref = -jnp.sum(jax.nn.log_sigmoid(pos) + jax.nn.log_sigmoid(neg)) / batch_size

    np.testing.assert_allclose(np.asarray(loss), np.asarray(ref),
                               rtol=1e-5, atol=1e-5)
    print("KERNEL_OK")
</pallas_src>

<mosaic_0001>
module attributes {stable_mosaic.version = 11 : i64} {
  func.func @skipgram_loss_kernel(%arg0: i32, %arg1: i32, %arg2: memref<6x128xi32, #tpu.memory_space<vmem>>, %arg3: memref<32x128xbf16, #tpu.memory_space<vmem>>, %arg4: memref<32x128xbf16, #tpu.memory_space<vmem>>, %arg5: memref<1x8x128xf32, #tpu.memory_space<vmem>>) attributes {dimension_semantics = [#tpu.dimension_semantics<parallel>, #tpu.dimension_semantics<arbitrary>], iteration_bounds = array<i64: 1, 1>, scalar_prefetch = 0 : i64, scratch_operands = 0 : i64, tpu.core_type = #tpu.core_type<tc>, window_params = [{transform_indices = @transform_0, window_bounds = array<i64: 6, 128>}, {pipeline_mode = #tpu.pipeline_mode<synchronous>, transform_indices = @transform_1, window_bounds = array<i64: 32, 128>}, {pipeline_mode = #tpu.pipeline_mode<synchronous>, transform_indices = @transform_2, window_bounds = array<i64: 32, 128>}, {transform_indices = @transform_3, window_bounds = array<i64: 1, 8, 128>}]} {
    %c0_i32 = arith.constant 0 : i32
    %0 = arith.cmpi eq, %arg1, %c0_i32 : i32
    %1 = arith.extui %0 : i1 to i32
    %c0_i32_0 = arith.constant 0 : i32
    %2 = arith.cmpi ne, %1, %c0_i32_0 : i32
    scf.if %2 {
      %cst_22 = arith.constant 0.000000e+00 : f32
      %86 = vector.broadcast %cst_22 : f32 to vector<1x8x128xf32>
      %c0_23 = arith.constant 0 : index
      %c0_24 = arith.constant 0 : index
      %c0_25 = arith.constant 0 : index
      %87 = vector.load %arg5[%c0_23, %c0_24, %c0_25] : memref<1x8x128xf32, #tpu.memory_space<vmem>>, vector<1x8x128xf32>
      tpu.vector_store %arg5[%c0_23, %c0_24, %c0_25], %86 {strides = array<i32>} : memref<1x8x128xf32, #tpu.memory_space<vmem>>, vector<1x8x128xf32>,
    } else {
    }
    %c0 = arith.constant 0 : index
    %c0_1 = arith.constant 0 : index
    %3 = vector.load %arg2[%c0, %c0_1] : memref<6x128xi32, #tpu.memory_space<vmem>>, vector<6x128xi32>
    %c0_2 = arith.constant 0 : index
    %c0_3 = arith.constant 0 : index
    %4 = vector.load %arg3[%c0_2, %c0_3] : memref<32x128xbf16, #tpu.memory_space<vmem>>, vector<32x128xbf16>
    %c0_4 = arith.constant 0 : index
    %c0_5 = arith.constant 0 : index
    %5 = vector.load %arg4[%c0_4, %c0_5] : memref<32x128xbf16, #tpu.memory_space<vmem>>, vector<32x128xbf16>
    %6 = tpu.iota {dimensions = array<i32: 0>} : vector<128x128xi32>
    %7 = vector.extract_strided_slice %3 {offsets = [0, 0], sizes = [1, 128], strides = [1, 1]} : vector<6x128xi32> to vector<1x128xi32>
    %8 = vector.broadcast %7 : vector<1x128xi32> to vector<128x128xi32>
    %9 = arith.cmpi eq, %6, %8 : vector<128x128xi32>
    %10 = arith.extui %9 : vector<128x128xi1> to vector<128x128xi32>
    %11 = arith.sitofp %10 : vector<128x128xi32> to vector<128x128xf32>
    %12 = arith.truncf %11 : vector<128x128xf32> to vector<128x128xbf16>
    %13 = vector.extract_strided_slice %3 {offsets = [1, 0], sizes = [1, 128], strides = [1, 1]} : vector<6x128xi32> to vector<1x128xi32>
    %14 = vector.broadcast %13 : vector<1x128xi32> to vector<128x128xi32>
    %15 = arith.cmpi eq, %6, %14 : vector<128x128xi32>
    %16 = arith.extui %15 : vector<128x128xi1> to vector<128x128xi32>
    %17 = arith.sitofp %16 : vector<128x128xi32> to vector<128x128xf32>
    %18 = arith.truncf %17 : vector<128x128xf32> to vector<128x128xbf16>
    %19 = vector.extract_strided_slice %3 {offsets = [2, 0], sizes = [1, 128], strides = [1, 1]} : vector<6x128xi32> to vector<1x128xi32>
    %20 = vector.broadcast %19 : vector<1x128xi32> to vector<128x128xi32>
    %21 = arith.cmpi eq, %6, %20 : vector<128x128xi32>
    %22 = arith.extui %21 : vector<128x128xi1> to vector<128x128xi32>
    %23 = arith.sitofp %22 : vector<128x128xi32> to vector<128x128xf32>
    %24 = vector.extract_strided_slice %3 {offsets = [3, 0], sizes = [1, 128], strides = [1, 1]} : vector<6x128xi32> to vector<1x128xi32>
    %25 = vector.broadcast %24 : vector<1x128xi32> to vector<128x128xi32>
    %26 = arith.cmpi eq, %6, %25 : vector<128x128xi32>
    %27 = arith.extui %26 : vector<128x128xi1> to vector<128x128xi32>
    %28 = arith.sitofp %27 : vector<128x128xi32> to vector<128x128xf32>
    %29 = arith.addf %23, %28 : vector<128x128xf32>
    %30 = vector.extract_strided_slice %3 {offsets = [4, 0], sizes = [1, 128], strides = [1, 1]} : vector<6x128xi32> to vector<1x128xi32>
    %31 = vector.broadcast %30 : vector<1x128xi32> to vector<128x128xi32>
    %32 = arith.cmpi eq, %6, %31 : vector<128x128xi32>
    %33 = arith.extui %32 : vector<128x128xi1> to vector<128x128xi32>
    %34 = arith.sitofp %33 : vector<128x128xi32> to vector<128x128xf32>
    %35 = arith.addf %29, %34 : vector<128x128xf32>
    %36 = vector.extract_strided_slice %3 {offsets = [5, 0], sizes = [1, 128], strides = [1, 1]} : vector<6x128xi32> to vector<1x128xi32>
    %37 = vector.broadcast %36 : vector<1x128xi32> to vector<128x128xi32>
    %38 = arith.cmpi eq, %6, %37 : vector<128x128xi32>
    %39 = arith.extui %38 : vector<128x128xi1> to vector<128x128xi32>
    %40 = arith.sitofp %39 : vector<128x128xi32> to vector<128x128xf32>
    %41 = arith.addf %35, %40 : vector<128x128xf32>
    %42 = arith.truncf %41 : vector<128x128xf32> to vector<128x128xbf16>
    %cst = arith.constant dense<0.000000e+00> : vector<32x128xf32>
    %43 = tpu.matmul %4, %12, %cst {dimension_numbers = #tpu.dot_dimension_numbers<[1], [0], [0], [1], [0, 0, 1, 1], [], []>} : vector<32x128xbf16>, vector<128x128xbf16>, vector<32x128xf32> -> vector<32x128xf32>
    %cst_6 = arith.constant dense<0.000000e+00> : vector<32x128xf32>
    %44 = tpu.matmul %5, %18, %cst_6 {dimension_numbers = #tpu.dot_dimension_numbers<[1], [0], [0], [1], [0, 0, 1, 1], [], []>} : vector<32x128xbf16>, vector<128x128xbf16>, vector<32x128xf32> -> vector<32x128xf32>
    %cst_7 = arith.constant dense<0.000000e+00> : vector<32x128xf32>
    %45 = tpu.matmul %5, %42, %cst_7 {dimension_numbers = #tpu.dot_dimension_numbers<[1], [0], [0], [1], [0, 0, 1, 1], [], []>} : vector<32x128xbf16>, vector<128x128xbf16>, vector<32x128xf32> -> vector<32x128xf32>
    %46 = arith.mulf %43, %44 : vector<32x128xf32>
    %cst_8 = arith.constant dense<0.000000e+00> : vector<128xf32>
    %47 = vector.multi_reduction <add>, %46, %cst_8 [0] : vector<32x128xf32> to vector<128xf32>
    %48 = vector.shape_cast %47 : vector<128xf32> to vector<1x128xf32>
    %49 = arith.mulf %43, %45 : vector<32x128xf32>
    %cst_9 = arith.constant dense<0.000000e+00> : vector<128xf32>
    %50 = vector.multi_reduction <add>, %49, %cst_9 [0] : vector<32x128xf32> to vector<128xf32>
    %51 = vector.shape_cast %50 : vector<128xf32> to vector<1x128xf32>
    %cst_10 = arith.constant 0.000000e+00 : f32
    %52 = vector.broadcast %cst_10 : f32 to vector<1x128xf32>
    %53 = arith.minimumf %48, %52 : vector<1x128xf32>
    %54 = math.absf %48 : vector<1x128xf32>
    %cst_11 = arith.constant 0.000000e+00 : f32
    %55 = vector.broadcast %cst_11 : f32 to vector<1x128xf32>
    %56 = arith.subf %55, %54 : vector<1x128xf32>
    %57 = math.exp %56 : vector<1x128xf32>
    %58 = math.log1p %57 : vector<1x128xf32>
    %59 = arith.subf %53, %58 : vector<1x128xf32>
    %cst_12 = arith.constant 0.000000e+00 : f32
    %60 = vector.broadcast %cst_12 : f32 to vector<1x128xf32>
    %61 = arith.minimumf %51, %60 : vector<1x128xf32>
    %62 = math.absf %51 : vector<1x128xf32>
    %cst_13 = arith.constant 0.000000e+00 : f32
    %63 = vector.broadcast %cst_13 : f32 to vector<1x128xf32>
    %64 = arith.subf %63, %62 : vector<1x128xf32>
    %65 = math.exp %64 : vector<1x128xf32>
    %66 = math.log1p %65 : vector<1x128xf32>
    %67 = arith.subf %61, %66 : vector<1x128xf32>
    %68 = arith.addf %59, %67 : vector<1x128xf32>
    %c1_i32 = arith.constant 1 : i32
    %69 = arith.muli %arg0, %c1_i32 : i32
    %70 = arith.addi %69, %arg1 : i32
    %c128_i32 = arith.constant 128 : i32
    %71 = arith.muli %70, %c128_i32 : i32
    %72 = tpu.iota {dimensions = array<i32: 1>} : vector<1x128xi32>
    %73 = vector.broadcast %71 : i32 to vector<1x128xi32>
    %74 = arith.addi %73, %72 : vector<1x128xi32>
    %c16_i32 = arith.constant 16 : i32
    %75 = vector.broadcast %c16_i32 : i32 to vector<1x128xi32>
    %76 = arith.cmpi slt, %74, %75 : vector<1x128xi32>
    %cst_14 = arith.constant 0.000000e+00 : f32
    %77 = vector.broadcast %cst_14 : f32 to vector<1x128xf32>
    %78 = arith.select %76, %68, %77 : vector<1x128xi1>, vector<1x128xf32>
    %c0_15 = arith.constant 0 : index
    %c0_16 = arith.constant 0 : index
    %c0_17 = arith.constant 0 : index
    %79 = vector.load %arg5[%c0_15, %c0_16, %c0_17] : memref<1x8x128xf32, #tpu.memory_space<vmem>>, vector<1x8x128xf32>
    %cst_18 = arith.constant dense<0.000000e+00> : vector<1xf32>
    %80 = vector.multi_reduction <add>, %78, %cst_18 [1] : vector<1x128xf32> to vector<1xf32>
    %81 = vector.shape_cast %80 : vector<1xf32> to vector<1x1xf32>
    %82 = vector.shape_cast %81 : vector<1x1xf32> to vector<1x1x1xf32>
    %83 = vector.broadcast %82 : vector<1x1x1xf32> to vector<1x8x128xf32>
    %84 = arith.addf %79, %83 : vector<1x8x128xf32>
    %c0_19 = arith.constant 0 : index
    %c0_20 = arith.constant 0 : index
    %c0_21 = arith.constant 0 : index
    %85 = vector.load %arg5[%c0_19, %c0_20, %c0_21] : memref<1x8x128xf32, #tpu.memory_space<vmem>>, vector<1x8x128xf32>
    tpu.vector_store %arg5[%c0_19, %c0_20, %c0_21], %84 {strides = array<i32>} : memref<1x8x128xf32, #tpu.memory_space<vmem>>, vector<1x8x128xf32>,
    return
  }
  func.func @transform_0(%arg0: i32, %arg1: i32) -> (i32, i32) {
    %c1_i32 = arith.constant 1 : i32
    %0 = arith.muli %arg0, %c1_i32 : i32
    %1 = arith.addi %0, %arg1 : i32
    %c0_i32 = arith.constant 0 : i32
    %c0_i32_0 = arith.constant 0 : i32
    return %c0_i32, %1 : i32, i32
  }
  func.func @transform_1(%arg0: i32, %arg1: i32) -> (i32, i32) {
    %c0_i32 = arith.constant 0 : i32
    %c0_i32_0 = arith.constant 0 : i32
    %c0_i32_1 = arith.constant 0 : i32
    return %c0_i32, %c0_i32_0 : i32, i32
  }
  func.func @transform_2(%arg0: i32, %arg1: i32) -> (i32, i32) {
    %c0_i32 = arith.constant 0 : i32
    %c0_i32_0 = arith.constant 0 : i32
    %c0_i32_1 = arith.constant 0 : i32
    return %c0_i32, %c0_i32_0 : i32, i32
  }
  func.func @transform_3(%arg0: i32, %arg1: i32) -> (i32, i32, i32) {
    %c0_i32 = arith.constant 0 : i32
    %c0_i32_0 = arith.constant 0 : i32
    %c0_i32_1 = arith.constant 0 : i32
    return %arg0, %c0_i32, %c0_i32_0 : i32, i32, i32
  }
}

</mosaic_0001>

<llo_original>
// kernel: tpu_custom_call.1
$region0: #{tpu_custom_call.1}
  #allocation0 [shape = 'u32[]', space=smem, size = 0x4, offset = 0x4, fixed_abs, tag = 'smem constant byte address 0x4 - core index']
  #allocation1 [shape = 'u32[144,128]{1,0:T(1,128)}', space=vmem, size = 0x12000, scoped, tag = 'internal scratch']
  %s0 = inlined_call_operand.hbm [shape: s32[6,128], index: 0, kind: input, shape index: {}]
  %s1 = inlined_call_operand.hbm [shape: bf16[32,128], index: 1, kind: input, shape index: {}]
  %s2 = inlined_call_operand.hbm [shape: bf16[32,128], index: 2, kind: input, shape index: {}]
  %s3 = inlined_call_operand.hbm [shape: f32[1,8,128], index: 3, kind: output, shape index: {}]
  %s4 = sld [smem:[#allocation0]]
  $region38: #{tpu_custom_call.1} parent=0
    _
  %s6 = ssub.s32 1, %s4
  %s7 = scalar_select 0, %s6, %s4
  $region1: #{tpu_custom_call.1} parent=0
    #allocation2 [shape = 'u8[4096]{0}', space=vmem, size = 0x1000, scoped, tag = 'input window, operand 0, single buffered']
    #allocation3 [shape = 's32[1]{0}', space=sflag, size = 0x4, scoped, tag = 'scoped memory for tpu_custom_call.1']
    #allocation4 [shape = 's32[1]{0}', space=sflag, size = 0x4, scoped, tag = 'scoped memory for tpu_custom_call.1']
    #allocation5 [shape = 'u8[8192]{0}', space=vmem, size = 0x2000, scoped, tag = 'input window, operand 1, single buffered']
    #allocation6 [shape = 's32[1]{0}', space=sflag, size = 0x4, scoped, tag = 'scoped memory for tpu_custom_call.1']
    #allocation7 [shape = 'u8[8192]{0}', space=vmem, size = 0x2000, scoped, tag = 'input window, operand 2, single buffered']
    #allocation8 [shape = 'u8[4096]{0}', space=vmem, size = 0x1000, scoped, tag = 'output window, operand 0, single buffered']
    %8 = vsyncpa [#allocation3], 0
    %9 = vsyncpa [#allocation6], 0
    %10 = vsyncpa [#allocation4], 0
    // Predicated region
    $region2: #{tpu_custom_call.1} parent=1 // pred_check
      _
    $region3: #{tpu_custom_call.1} parent=1 // pred_check_branch
      %12 = sbr.rel (0) target = $region5
    $region4: #{tpu_custom_call.1} parent=1 // pred_region
      %s13 = sadd.s32 0, 0
      %s15 = ssub.s32 128, 128
      %16 = vsyncadd [#allocation3], %s15
      %s17 = smul.addr %s13, 128
      %s18 = scalar_lea.hbm %s0, %s17
      %s20 = sshll.u32 [#allocation2], 4
      %s21 = int_to_ptr.vmem [resolvable:$true] %s20
      %23 = dma.hbm_to_vmem [thread:$0]  %s18, 128, %s21, [#allocation3]
    $region5: #{tpu_custom_call.1} parent=1 // pred_fallthru
      _
    // Predicated region
    $region6: #{tpu_custom_call.1} parent=1 // pred_check
      _
    $region7: #{tpu_custom_call.1} parent=1 // pred_check_branch
      %25 = sbr.rel (0) target = $region9
    $region8: #{tpu_custom_call.1} parent=1 // pred_region
      %s27 = ssub.s32 256, 256
      %28 = vsyncadd [#allocation6], %s27
      %s29 = sshll.u32 [#allocation5], 4
      %s30 = int_to_ptr.vmem [resolvable:$true] %s29
      %35 = dma.hbm_to_vmem [thread:$0]  %s1, 256, %s30, [#allocation6], 64, 64, 4
    $region9: #{tpu_custom_call.1} parent=1 // pred_fallthru
      _
    // Predicated region
    $region10: #{tpu_custom_call.1} parent=1 // pred_check
      _
    $region11: #{tpu_custom_call.1} parent=1 // pred_check_branch
      %37 = sbr.rel (0) target = $region13
    $region12: #{tpu_custom_call.1} parent=1 // pred_region
      %s39 = ssub.s32 256, 256
      %40 = vsyncadd [#allocation6], %s39
      %s41 = sshll.u32 [#allocation7], 4
      %s42 = int_to_ptr.vmem [resolvable:$true] %s41
      %47 = dma.hbm_to_vmem [thread:$0]  %s2, 256, %s42, [#allocation6], 64, 64, 4
    $region13: #{tpu_custom_call.1} parent=1 // pred_fallthru
      _
    // Predicated region
    $region14: #{tpu_custom_call.1} parent=1 // pred_check
      _
    $region15: #{tpu_custom_call.1} parent=1 // pred_check_branch
      %49 = sbr.rel (0) target = $region17
    $region16: #{tpu_custom_call.1} parent=1 // pred_region
      %50 = dma.done [#allocation3], 128
    $region17: #{tpu_custom_call.1} parent=1 // pred_fallthru
      _
    // Predicated region
    $region18: #{tpu_custom_call.1} parent=1 // pred_check
      _
    $region19: #{tpu_custom_call.1} parent=1 // pred_check_branch
      %52 = sbr.rel (0) target = $region21
    $region20: #{tpu_custom_call.1} parent=1 // pred_region
      %53 = dma.done [#allocation6], 256
    $region21: #{tpu_custom_call.1} parent=1 // pred_fallthru
      _
    // Predicated region
    $region22: #{tpu_custom_call.1} parent=1 // pred_check
      _
    $region23: #{tpu_custom_call.1} parent=1 // pred_check_branch
      %55 = sbr.rel (0) target = $region25
    $region24: #{tpu_custom_call.1} parent=1 // pred_region
      %56 = dma.done [#allocation6], 256
    $region25: #{tpu_custom_call.1} parent=1 // pred_fallthru
      _
    %s57 = sadd.s32 0, 0
    %p59 = scmp.eq.s32.totalorder 0, 0
    // Predicated region
    $region26: #{tpu_custom_call.1} parent=1 // pred_check
      %p60 = pneg %p59
    $region27: #{tpu_custom_call.1} parent=1 // pred_check_branch
      %62 = sbr.rel (%p60) target = $region29
    $region28: #{tpu_custom_call.1} parent=1 // pred_region
      %63 = vst [vmem:[#allocation8] sm:$0xff] 0.0
    $region29: #{tpu_custom_call.1} parent=1 // pred_fallthru
      _
    %v64 = vld [vmem:[#allocation2] sm:$0x3f]
    %v65 = vld [vmem:[#allocation5] sm:$0xf]
    %v66 = vld [vmem:[#allocation5 + $0x4] sm:$0xf]
    %v67 = vld [vmem:[#allocation5 + $0x8] sm:$0xf]
    %v68 = vld [vmem:[#allocation5 + $0xc] sm:$0xf]
    %v69 = vld [vmem:[#allocation7] sm:$0xf]
    %v70 = vld [vmem:[#allocation7 + $0x4] sm:$0xf]
    %v71 = vld [vmem:[#allocation7 + $0x8] sm:$0xf]
    %v72 = vld [vmem:[#allocation7 + $0xc] sm:$0xf]
    %v73 = vlaneseq
    %v74 = vshrl.u32 %v73, 7
    %v75 = vadd.s32 %v74, 8
    %v76 = vadd.s32 %v74, 16
    %v77 = vadd.s32 %v74, 24
    %v78 = vadd.s32 %v74, 32
    %v79 = vadd.s32 %v74, 40
    %v80 = vadd.s32 %v74, 48
    %v81 = vadd.s32 %v74, 56
    %v82 = vadd.s32 %v74, 64
    %v83 = vadd.s32 %v74, 72
    %v84 = vadd.s32 %v74, 80
    %v85 = vadd.s32 %v74, 88
    %v86 = vadd.s32 %v74, 96
    %v87 = vadd.s32 %v74, 104
    %v88 = vadd.s32 %v74, 112
    %v89 = vadd.s32 %v74, 120
    %v90 = vlaneseq
    %v91 = vshrl.u32 %v90, 7
    %v92 = vsub.s32 0, %v91
    %v93 = vrot.slane %v64, %v92
    %vm94 = vcmp.eq.s32.totalorder %v74, %v93
    %vm95 = vcmp.eq.s32.totalorder %v75, %v93
    %vm96 = vcmp.eq.s32.totalorder %v76, %v93
    %vm97 = vcmp.eq.s32.totalorder %v77, %v93
    %vm98 = vcmp.eq.s32.totalorder %v78, %v93
    %vm99 = vcmp.eq.s32.totalorder %v79, %v93
    %vm100 = vcmp.eq.s32.totalorder %v80, %v93
    %vm101 = vcmp.eq.s32.totalorder %v81, %v93
    %vm102 = vcmp.eq.s32.totalorder %v82, %v93
    %vm103 = vcmp.eq.s32.totalorder %v83, %v93
    %vm104 = vcmp.eq.s32.totalorder %v84, %v93
    %vm105 = vcmp.eq.s32.totalorder %v85, %v93
    %vm106 = vcmp.eq.s32.totalorder %v86, %v93
    %vm107 = vcmp.eq.s32.totalorder %v87, %v93
    %vm108 = vcmp.eq.s32.totalorder %v88, %v93
    %vm109 = vcmp.eq.s32.totalorder %v89, %v93
    %v110 = vsel %vm94, 1, 0
    %v111 = vsel %vm95, 1, 0
    %v112 = vsel %vm96, 1, 0
    %v113 = vsel %vm97, 1, 0
    %v114 = vsel %vm98, 1, 0
    %v115 = vsel %vm99, 1, 0
    %v116 = vsel %vm100, 1, 0
    %v117 = vsel %vm101, 1, 0
    %v118 = vsel %vm102, 1, 0
    %v119 = vsel %vm103, 1, 0
    %v120 = vsel %vm104, 1, 0
    %v121 = vsel %vm105, 1, 0
    %v122 = vsel %vm106, 1, 0
    %v123 = vsel %vm107, 1, 0
    %v124 = vsel %vm108, 1, 0
    %v125 = vsel %vm109, 1, 0
    %v126 = vcvt.s32.f32 %v110
    %v127 = vcvt.s32.f32 %v111
    %v128 = vcvt.s32.f32 %v112
    %v129 = vcvt.s32.f32 %v113
    %v130 = vcvt.s32.f32 %v114
    %v131 = vcvt.s32.f32 %v115
    %v132 = vcvt.s32.f32 %v116
    %v133 = vcvt.s32.f32 %v117
    %v134 = vcvt.s32.f32 %v118
    %v135 = vcvt.s32.f32 %v119
    %v136 = vcvt.s32.f32 %v120
    %v137 = vcvt.s32.f32 %v121
    %v138 = vcvt.s32.f32 %v122
    %v139 = vcvt.s32.f32 %v123
    %v140 = vcvt.s32.f32 %v124
    %v141 = vcvt.s32.f32 %v125
    %v142 = vpack.c.bf16 %v127, %v126
    %v143 = vpack.c.bf16 %v129, %v128
    %v144 = vpack.c.bf16 %v131, %v130
    %v145 = vpack.c.bf16 %v133, %v132
    %v146 = vpack.c.bf16 %v135, %v134
    %v147 = vpack.c.bf16 %v137, %v136
    %v148 = vpack.c.bf16 %v139, %v138
    %v149 = vpack.c.bf16 %v141, %v140
    %v150 = vlaneseq
    %v151 = vshrl.u32 %v150, 7
    %v152 = vsub.s32 1, %v151
    %v153 = vrot.slane %v64, %v152
    %vm154 = vcmp.eq.s32.totalorder %v74, %v153
    %vm155 = vcmp.eq.s32.totalorder %v75, %v153
    %vm156 = vcmp.eq.s32.totalorder %v76, %v153
    %vm157 = vcmp.eq.s32.totalorder %v77, %v153
    %vm158 = vcmp.eq.s32.totalorder %v78, %v153
    %vm159 = vcmp.eq.s32.totalorder %v79, %v153
    %vm160 = vcmp.eq.s32.totalorder %v80, %v153
    %vm161 = vcmp.eq.s32.totalorder %v81, %v153
    %vm162 = vcmp.eq.s32.totalorder %v82, %v153
    %vm163 = vcmp.eq.s32.totalorder %v83, %v153
    %vm164 = vcmp.eq.s32.totalorder %v84, %v153
    %vm165 = vcmp.eq.s32.totalorder %v85, %v153
    %vm166 = vcmp.eq.s32.totalorder %v86, %v153
    %vm167 = vcmp.eq.s32.totalorder %v87, %v153
    %vm168 = vcmp.eq.s32.totalorder %v88, %v153
    %vm169 = vcmp.eq.s32.totalorder %v89, %v153
    %v170 = vsel %vm154, 1, 0
    %v171 = vsel %vm155, 1, 0
    %v172 = vsel %vm156, 1, 0
    %v173 = vsel %vm157, 1, 0
    %v174 = vsel %vm158, 1, 0
    %v175 = vsel %vm159, 1, 0
    %v176 = vsel %vm160, 1, 0
    %v177 = vsel %vm161, 1, 0
    %v178 = vsel %vm162, 1, 0
    %v179 = vsel %vm163, 1, 0
    %v180 = vsel %vm164, 1, 0
    %v181 = vsel %vm165, 1, 0
    %v182 = vsel %vm166, 1, 0
    %v183 = vsel %vm167, 1, 0
    %v184 = vsel %vm168, 1, 0
    %v185 = vsel %vm169, 1, 0
    %v186 = vcvt.s32.f32 %v170
    %v187 = vcvt.s32.f32 %v171
    %v188 = vcvt.s32.f32 %v172
    %v189 = vcvt.s32.f32 %v173
    %v190 = vcvt.s32.f32 %v174
    %v191 = vcvt.s32.f32 %v175
    %v192 = vcvt.s32.f32 %v176
    %v193 = vcvt.s32.f32 %v177
    %v194 = vcvt.s32.f32 %v178
    %v195 = vcvt.s32.f32 %v179
    %v196 = vcvt.s32.f32 %v180
    %v197 = vcvt.s32.f32 %v181
    %v198 = vcvt.s32.f32 %v182
    %v199 = vcvt.s32.f32 %v183
    %v200 = vcvt.s32.f32 %v184
    %v201 = vcvt.s32.f32 %v185
    %v202 = vpack.c.bf16 %v187, %v186
    %v203 = vpack.c.bf16 %v189, %v188
    %v204 = vpack.c.bf16 %v191, %v190
    %v205 = vpack.c.bf16 %v193, %v192
    %v206 = vpack.c.bf16 %v195, %v194
    %v207 = vpack.c.bf16 %v197, %v196
    %v208 = vpack.c.bf16 %v199, %v198
    %v209 = vpack.c.bf16 %v201, %v200
    %v210 = vlaneseq
    %v211 = vshrl.u32 %v210, 7
    %v212 = vsub.s32 2, %v211
    %v213 = vrot.slane %v64, %v212
    %vm214 = vcmp.eq.s32.totalorder %v74, %v213
    %vm215 = vcmp.eq.s32.totalorder %v75, %v213
    %vm216 = vcmp.eq.s32.totalorder %v76, %v213
    %vm217 = vcmp.eq.s32.totalorder %v77, %v213
    %vm218 = vcmp.eq.s32.totalorder %v78, %v213
    %vm219 = vcmp.eq.s32.totalorder %v79, %v213
    %vm220 = vcmp.eq.s32.totalorder %v80, %v213
    %vm221 = vcmp.eq.s32.totalorder %v81, %v213
    %vm222 = vcmp.eq.s32.totalorder %v82, %v213
    %vm223 = vcmp.eq.s32.totalorder %v83, %v213
    %vm224 = vcmp.eq.s32.totalorder %v84, %v213
    %vm225 = vcmp.eq.s32.totalorder %v85, %v213
    %vm226 = vcmp.eq.s32.totalorder %v86, %v213
    %vm227 = vcmp.eq.s32.totalorder %v87, %v213
    %vm228 = vcmp.eq.s32.totalorder %v88, %v213
    %vm229 = vcmp.eq.s32.totalorder %v89, %v213
    %v230 = vsel %vm214, 1, 0
    %v231 = vsel %vm215, 1, 0
    %v232 = vsel %vm216, 1, 0
    %v233 = vsel %vm217, 1, 0
    %v234 = vsel %vm218, 1, 0
    %v235 = vsel %vm219, 1, 0
    %v236 = vsel %vm220, 1, 0
    %v237 = vsel %vm221, 1, 0
    %v238 = vsel %vm222, 1, 0
    %v239 = vsel %vm223, 1, 0
    %v240 = vsel %vm224, 1, 0
    %v241 = vsel %vm225, 1, 0
    %v242 = vsel %vm226, 1, 0
    %v243 = vsel %vm227, 1, 0
    %v244 = vsel %vm228, 1, 0
    %v245 = vsel %vm229, 1, 0
    %v246 = vcvt.s32.f32 %v230
    %v247 = vcvt.s32.f32 %v231
    %v248 = vcvt.s32.f32 %v232
    %v249 = vcvt.s32.f32 %v233
    %v250 = vcvt.s32.f32 %v234
    %v251 = vcvt.s32.f32 %v235
    %v252 = vcvt.s32.f32 %v236
    %v253 = vcvt.s32.f32 %v237
    %v254 = vcvt.s32.f32 %v238
    %v255 = vcvt.s32.f32 %v239
    %v256 = vcvt.s32.f32 %v240
    %v257 = vcvt.s32.f32 %v241
    %v258 = vcvt.s32.f32 %v242
    %v259 = vcvt.s32.f32 %v243
    %v260 = vcvt.s32.f32 %v244
    %v261 = vcvt.s32.f32 %v245
    %v262 = vlaneseq
    %v263 = vshrl.u32 %v262, 7
    %v264 = vsub.s32 3, %v263
    %v265 = vrot.slane %v64, %v264
    %vm266 = vcmp.eq.s32.totalorder %v74, %v265
    %vm267 = vcmp.eq.s32.totalorder %v75, %v265
    %vm268 = vcmp.eq.s32.totalorder %v76, %v265
    %vm269 = vcmp.eq.s32.totalorder %v77, %v265
    %vm270 = vcmp.eq.s32.totalorder %v78, %v265
    %vm271 = vcmp.eq.s32.totalorder %v79, %v265
    %vm272 = vcmp.eq.s32.totalorder %v80, %v265
    %vm273 = vcmp.eq.s32.totalorder %v81, %v265
    %vm274 = vcmp.eq.s32.totalorder %v82, %v265
    %vm275 = vcmp.eq.s32.totalorder %v83, %v265
    %vm276 = vcmp.eq.s32.totalorder %v84, %v265
    %vm277 = vcmp.eq.s32.totalorder %v85, %v265
    %vm278 = vcmp.eq.s32.totalorder %v86, %v265
    %vm279 = vcmp.eq.s32.totalorder %v87, %v265
    %vm280 = vcmp.eq.s32.totalorder %v88, %v265
    %vm281 = vcmp.eq.s32.totalorder %v89, %v265
    %v282 = vsel %vm266, 1, 0
    %v283 = vsel %vm267, 1, 0
    %v284 = vsel %vm268, 1, 0
    %v285 = vsel %vm269, 1, 0
    %v286 = vsel %vm270, 1, 0
    %v287 = vsel %vm271, 1, 0
    %v288 = vsel %vm272, 1, 0
    %v289 = vsel %vm273, 1, 0
    %v290 = vsel %vm274, 1, 0
    %v291 = vsel %vm275, 1, 0
    %v292 = vsel %vm276, 1, 0
    %v293 = vsel %vm277, 1, 0
    %v294 = vsel %vm278, 1, 0
    %v295 = vsel %vm279, 1, 0
    %v296 = vsel %vm280, 1, 0
    %v297 = vsel %vm281, 1, 0
    %v298 = vcvt.s32.f32 %v282
    %v299 = vcvt.s32.f32 %v283
    %v300 = vcvt.s32.f32 %v284
    %v301 = vcvt.s32.f32 %v285
    %v302 = vcvt.s32.f32 %v286
    %v303 = vcvt.s32.f32 %v287
    %v304 = vcvt.s32.f32 %v288
    %v305 = vcvt.s32.f32 %v289
    %v306 = vcvt.s32.f32 %v290
    %v307 = vcvt.s32.f32 %v291
    %v308 = vcvt.s32.f32 %v292
    %v309 = vcvt.s32.f32 %v293
    %v310 = vcvt.s32.f32 %v294
    %v311 = vcvt.s32.f32 %v295
    %v312 = vcvt.s32.f32 %v296
    %v313 = vcvt.s32.f32 %v297
    %v314 = vadd.f32 %v246, %v298
    %v315 = vadd.f32 %v247, %v299
    %v316 = vadd.f32 %v248, %v300
    %v317 = vadd.f32 %v249, %v301
    %v318 = vadd.f32 %v250, %v302
    %v319 = vadd.f32 %v251, %v303
    %v320 = vadd.f32 %v252, %v304
    %v321 = vadd.f32 %v253, %v305
    %v322 = vadd.f32 %v254, %v306
    %v323 = vadd.f32 %v255, %v307
    %v324 = vadd.f32 %v256, %v308
    %v325 = vadd.f32 %v257, %v309
    %v326 = vadd.f32 %v258, %v310
    %v327 = vadd.f32 %v259, %v311
    %v328 = vadd.f32 %v260, %v312
    %v329 = vadd.f32 %v261, %v313
    %v330 = vlaneseq
    %v331 = vshrl.u32 %v330, 7
    %v332 = vsub.s32 4, %v331
    %v333 = vrot.slane %v64, %v332
    %vm334 = vcmp.eq.s32.totalorder %v74, %v333
    %vm335 = vcmp.eq.s32.totalorder %v75, %v333
    %vm336 = vcmp.eq.s32.totalorder %v76, %v333
    %vm337 = vcmp.eq.s32.totalorder %v77, %v333
    %vm338 = vcmp.eq.s32.totalorder %v78, %v333
    %vm339 = vcmp.eq.s32.totalorder %v79, %v333
    %vm340 = vcmp.eq.s32.totalorder %v80, %v333
    %vm341 = vcmp.eq.s32.totalorder %v81, %v333
    %vm342 = vcmp.eq.s32.totalorder %v82, %v333
    %vm343 = vcmp.eq.s32.totalorder %v83, %v333
    %vm344 = vcmp.eq.s32.totalorder %v84, %v333
    %vm345 = vcmp.eq.s32.totalorder %v85, %v333
    %vm346 = vcmp.eq.s32.totalorder %v86, %v333
    %vm347 = vcmp.eq.s32.totalorder %v87, %v333
    %vm348 = vcmp.eq.s32.totalorder %v88, %v333
    %vm349 = vcmp.eq.s32.totalorder %v89, %v333
    %v350 = vsel %vm334, 1, 0
    %v351 = vsel %vm335, 1, 0
    %v352 = vsel %vm336, 1, 0
    %v353 = vsel %vm337, 1, 0
    %v354 = vsel %vm338, 1, 0
    %v355 = vsel %vm339, 1, 0
    %v356 = vsel %vm340, 1, 0
    %v357 = vsel %vm341, 1, 0
    %v358 = vsel %vm342, 1, 0
    %v359 = vsel %vm343, 1, 0
    %v360 = vsel %vm344, 1, 0
    %v361 = vsel %vm345, 1, 0
    %v362 = vsel %vm346, 1, 0
    %v363 = vsel %vm347, 1, 0
    %v364 = vsel %vm348, 1, 0
    %v365 = vsel %vm349, 1, 0
    %v366 = vcvt.s32.f32 %v350
    %v367 = vcvt.s32.f32 %v351
    %v368 = vcvt.s32.f32 %v352
    %v369 = vcvt.s32.f32 %v353
    %v370 = vcvt.s32.f32 %v354
    %v371 = vcvt.s32.f32 %v355
    %v372 = vcvt.s32.f32 %v356
    %v373 = vcvt.s32.f32 %v357
    %v374 = vcvt.s32.f32 %v358
    %v375 = vcvt.s32.f32 %v359
    %v376 = vcvt.s32.f32 %v360
    %v377 = vcvt.s32.f32 %v361
    %v378 = vcvt.s32.f32 %v362
    %v379 = vcvt.s32.f32 %v363
    %v380 = vcvt.s32.f32 %v364
    %v381 = vcvt.s32.f32 %v365
    %v382 = vadd.f32 %v314, %v366
    %v383 = vadd.f32 %v315, %v367
    %v384 = vadd.f32 %v316, %v368
    %v385 = vadd.f32 %v317, %v369
    %v386 = vadd.f32 %v318, %v370
    %v387 = vadd.f32 %v319, %v371
    %v388 = vadd.f32 %v320, %v372
    %v389 = vadd.f32 %v321, %v373
    %v390 = vadd.f32 %v322, %v374
    %v391 = vadd.f32 %v323, %v375
    %v392 = vadd.f32 %v324, %v376
    %v393 = vadd.f32 %v325, %v377
    %v394 = vadd.f32 %v326, %v378
    %v395 = vadd.f32 %v327, %v379
    %v396 = vadd.f32 %v328, %v380
    %v397 = vadd.f32 %v329, %v381
    %v398 = vlaneseq
    %v399 = vshrl.u32 %v398, 7
    %v400 = vsub.s32 5, %v399
    %v401 = vrot.slane %v64, %v400
    %vm402 = vcmp.eq.s32.totalorder %v74, %v401
    %vm403 = vcmp.eq.s32.totalorder %v75, %v401
    %vm404 = vcmp.eq.s32.totalorder %v76, %v401
    %vm405 = vcmp.eq.s32.totalorder %v77, %v401
    %vm406 = vcmp.eq.s32.totalorder %v78, %v401
    %vm407 = vcmp.eq.s32.totalorder %v79, %v401
    %vm408 = vcmp.eq.s32.totalorder %v80, %v401
    %vm409 = vcmp.eq.s32.totalorder %v81, %v401
    %vm410 = vcmp.eq.s32.totalorder %v82, %v401
    %vm411 = vcmp.eq.s32.totalorder %v83, %v401
    %vm412 = vcmp.eq.s32.totalorder %v84, %v401
    %vm413 = vcmp.eq.s32.totalorder %v85, %v401
    %vm414 = vcmp.eq.s32.totalorder %v86, %v401
    %vm415 = vcmp.eq.s32.totalorder %v87, %v401
    %vm416 = vcmp.eq.s32.totalorder %v88, %v401
    %vm417 = vcmp.eq.s32.totalorder %v89, %v401
    %v418 = vsel %vm402, 1, 0
    %v419 = vsel %vm403, 1, 0
    %v420 = vsel %vm404, 1, 0
    %v421 = vsel %vm405, 1, 0
    %v422 = vsel %vm406, 1, 0
    %v423 = vsel %vm407, 1, 0
    %v424 = vsel %vm408, 1, 0
    %v425 = vsel %vm409, 1, 0
    %v426 = vsel %vm410, 1, 0
    %v427 = vsel %vm411, 1, 0
    %v428 = vsel %vm412, 1, 0
    %v429 = vsel %vm413, 1, 0
    %v430 = vsel %vm414, 1, 0
    %v431 = vsel %vm415, 1, 0
    %v432 = vsel %vm416, 1, 0
    %v433 = vsel %vm417, 1, 0
    %v434 = vcvt.s32.f32 %v418
    %v435 = vcvt.s32.f32 %v419
    %v436 = vcvt.s32.f32 %v420
    %v437 = vcvt.s32.f32 %v421
    %v438 = vcvt.s32.f32 %v422
    %v439 = vcvt.s32.f32 %v423
    %v440 = vcvt.s32.f32 %v424
    %v441 = vcvt.s32.f32 %v425
    %v442 = vcvt.s32.f32 %v426
    %v443 = vcvt.s32.f32 %v427
    %v444 = vcvt.s32.f32 %v428
    %v445 = vcvt.s32.f32 %v429
    %v446 = vcvt.s32.f32 %v430
    %v447 = vcvt.s32.f32 %v431
    %v448 = vcvt.s32.f32 %v432
    %v449 = vcvt.s32.f32 %v433
    %v450 = vadd.f32 %v382, %v434
    %v451 = vadd.f32 %v383, %v435
    %v452 = vadd.f32 %v384, %v436
    %v453 = vadd.f32 %v385, %v437
    %v454 = vadd.f32 %v386, %v438
    %v455 = vadd.f32 %v387, %v439
    %v456 = vadd.f32 %v388, %v440
    %v457 = vadd.f32 %v389, %v441
    %v458 = vadd.f32 %v390, %v442
    %v459 = vadd.f32 %v391, %v443
    %v460 = vadd.f32 %v392, %v444
    %v461 = vadd.f32 %v393, %v445
    %v462 = vadd.f32 %v394, %v446
    %v463 = vadd.f32 %v395, %v447
    %v464 = vadd.f32 %v396, %v448
    %v465 = vadd.f32 %v397, %v449
    %v466 = vpack.c.bf16 %v451, %v450
    %v467 = vpack.c.bf16 %v453, %v452
    %v468 = vpack.c.bf16 %v455, %v454
    %v469 = vpack.c.bf16 %v457, %v456
    %v470 = vpack.c.bf16 %v459, %v458
    %v471 = vpack.c.bf16 %v461, %v460
    %v472 = vpack.c.bf16 %v463, %v462
    %v473 = vpack.c.bf16 %v465, %v464
    %v478 = vunpack.c.l.b16 %v65
    %v479 = vunpack.c.l.b16 %v66
    %v480 = vunpack.c.l.b16 %v67
    %v481 = vunpack.c.l.b16 %v68
    %v482 = vpack.c.b16 %v479, %v478
    %v483 = vpack.c.b16 %v481, %v480
    %486 = vmatprep.subr.bf16.mxu0 0
    %487 = vmatpush1.bf16.msra.mxu0 %v142
    %488 = vmatprep.subr.bf16.mxu0 0
    %489 = vmatpush1.bf16.msra.mxu0 %v143
    %490 = vmatprep.subr.bf16.mxu0 0
    %491 = vmatpush1.bf16.msra.mxu0 %v144
    %492 = vmatprep.subr.bf16.mxu0 0
    %493 = vmatpush1.bf16.msra.mxu0 %v145
    %494 = vmatprep.subr.bf16.mxu0 0
    %495 = vmatpush1.bf16.msra.mxu0 %v146
    %496 = vmatprep.subr.bf16.mxu0 0
    %497 = vmatpush1.bf16.msra.mxu0 %v147
    %498 = vmatprep.subr.bf16.mxu0 0
    %499 = vmatpush1.bf16.msra.mxu0 %v148
    %500 = vmatprep.subr.bf16.mxu0 0
    %501 = vmatpush1.bf16.msra.mxu0 %v149
    %502 = vmatprep.subr.bf16.mxu0 0
    %503 = vmatpush1.bf16.msra.mxu0 0
    %504 = vmatprep.subr.bf16.mxu0 0
    %505 = vmatpush1.bf16.msra.mxu0 0
    %506 = vmatprep.subr.bf16.mxu0 0
    %507 = vmatpush1.bf16.msra.mxu0 0
    %508 = vmatprep.subr.bf16.mxu0 0
    %509 = vmatpush1.bf16.msra.mxu0 0
    %510 = vmatprep.subr.bf16.mxu0 0
    %511 = vmatpush1.bf16.msra.mxu0 0
    %512 = vmatprep.subr.bf16.mxu0 0
    %513 = vmatpush1.bf16.msra.mxu0 0
    %514 = vmatprep.subr.bf16.mxu0 0
    %515 = vmatpush1.bf16.msra.mxu0 0
    %516 = vmatprep.subr.bf16.mxu0 0
    %517 = vmatpush1.bf16.msra.mxu0 0
    %518 = vmatprep.mubr.bf16.mxu0 0
    %519 = vmatmul.mubr.bf16.gmra.mrb[0].mxu0 %v482
    %v520 = vpop.f32.mrb[0].mxu0
    %v521 = vadd.f32 0.0, %v520
    %v522 = vpop.f32.mrb[0].mxu0
    %v523 = vpop.f32.mrb[0].mxu0
    %v524 = vadd.f32 0.0, %v523
    %v525 = vpop.f32.mrb[0].mxu0
    %526 = vmatprep.mubr.bf16.mxu0 0
    %527 = vmatmul.mubr.bf16.gmra.mrb[0].mxu0 %v483
    %v528 = vpop.f32.mrb[0].mxu0
    %v529 = vadd.f32 0.0, %v528
    %v530 = vpop.f32.mrb[0].mxu0
    %v531 = vpop.f32.mrb[0].mxu0
    %v532 = vadd.f32 0.0, %v531
    %v533 = vpop.f32.mrb[0].mxu0
    %534 = vdwg.mxu0
    %v539 = vunpack.c.l.b16 %v69
    %v540 = vunpack.c.l.b16 %v70
    %v541 = vunpack.c.l.b16 %v71
    %v542 = vunpack.c.l.b16 %v72
    %v543 = vpack.c.b16 %v540, %v539
    %v544 = vpack.c.b16 %v542, %v541
    %547 = vmatprep.subr.bf16.mxu0 0
    %548 = vmatpush1.bf16.msra.mxu0 %v202
    %549 = vmatprep.subr.bf16.mxu0 0
    %550 = vmatpush1.bf16.msra.mxu0 %v203
    %551 = vmatprep.subr.bf16.mxu0 0
    %552 = vmatpush1.bf16.msra.mxu0 %v204
    %553 = vmatprep.subr.bf16.mxu0 0
    %554 = vmatpush1.bf16.msra.mxu0 %v205
    %555 = vmatprep.subr.bf16.mxu0 0
    %556 = vmatpush1.bf16.msra.mxu0 %v206
    %557 = vmatprep.subr.bf16.mxu0 0
    %558 = vmatpush1.bf16.msra.mxu0 %v207
    %559 = vmatprep.subr.bf16.mxu0 0
    %560 = vmatpush1.bf16.msra.mxu0 %v208
    %561 = vmatprep.subr.bf16.mxu0 0
    %562 = vmatpush1.bf16.msra.mxu0 %v209
    %563 = vmatprep.subr.bf16.mxu0 0
    %564 = vmatpush1.bf16.msra.mxu0 0
    %565 = vmatprep.subr.bf16.mxu0 0
    %566 = vmatpush1.bf16.msra.mxu0 0
    %567 = vmatprep.subr.bf16.mxu0 0
    %568 = vmatpush1.bf16.msra.mxu0 0
    %569 = vmatprep.subr.bf16.mxu0 0
    %570 = vmatpush1.bf16.msra.mxu0 0
    %571 = vmatprep.subr.bf16.mxu0 0
    %572 = vmatpush1.bf16.msra.mxu0 0
    %573 = vmatprep.subr.bf16.mxu0 0
    %574 = vmatpush1.bf16.msra.mxu0 0
    %575 = vmatprep.subr.bf16.mxu0 0
    %576 = vmatpush1.bf16.msra.mxu0 0
    %577 = vmatprep.subr.bf16.mxu0 0
    %578 = vmatpush1.bf16.msra.mxu0 0
    %579 = vmatprep.mubr.bf16.mxu0 0
    %580 = vmatmul.mubr.bf16.gmra.mrb[0].mxu0 %v543
    %v581 = vpop.f32.mrb[0].mxu0
    %v582 = vadd.f32 0.0, %v581
    %v583 = vpop.f32.mrb[0].mxu0
    %v584 = vpop.f32.mrb[0].mxu0
    %v585 = vadd.f32 0.0, %v584
    %v586 = vpop.f32.mrb[0].mxu0
    %587 = vmatprep.mubr.bf16.mxu0 0
    %588 = vmatmul.mubr.bf16.gmra.mrb[0].mxu0 %v544
    %v589 = vpop.f32.mrb[0].mxu0
    %v590 = vadd.f32 0.0, %v589
    %v591 = vpop.f32.mrb[0].mxu0
    %v592 = vpop.f32.mrb[0].mxu0
    %v593 = vadd.f32 0.0, %v592
    %v594 = vpop.f32.mrb[0].mxu0
    %595 = vdwg.mxu0
    %596 = vmatprep.subr.bf16.mxu0 0
    %597 = vmatpush1.bf16.msra.mxu0 %v466
    %598 = vmatprep.subr.bf16.mxu0 0
    %599 = vmatpush1.bf16.msra.mxu0 %v467
    %600 = vmatprep.subr.bf16.mxu0 0
    %601 = vmatpush1.bf16.msra.mxu0 %v468
    %602 = vmatprep.subr.bf16.mxu0 0
    %603 = vmatpush1.bf16.msra.mxu0 %v469
    %604 = vmatprep.subr.bf16.mxu0 0
    %605 = vmatpush1.bf16.msra.mxu0 %v470
    %606 = vmatprep.subr.bf16.mxu0 0
    %607 = vmatpush1.bf16.msra.mxu0 %v471
    %608 = vmatprep.subr.bf16.mxu0 0
    %609 = vmatpush1.bf16.msra.mxu0 %v472
    %610 = vmatprep.subr.bf16.mxu0 0
    %611 = vmatpush1.bf16.msra.mxu0 %v473
    %612 = vmatprep.subr.bf16.mxu0 0
    %613 = vmatpush1.bf16.msra.mxu0 0
    %614 = vmatprep.subr.bf16.mxu0 0
    %615 = vmatpush1.bf16.msra.mxu0 0
    %616 = vmatprep.subr.bf16.mxu0 0
    %617 = vmatpush1.bf16.msra.mxu0 0
    %618 = vmatprep.subr.bf16.mxu0 0
    %619 = vmatpush1.bf16.msra.mxu0 0
    %620 = vmatprep.subr.bf16.mxu0 0
    %621 = vmatpush1.bf16.msra.mxu0 0
    %622 = vmatprep.subr.bf16.mxu0 0
    %623 = vmatpush1.bf16.msra.mxu0 0
    %624 = vmatprep.subr.bf16.mxu0 0
    %625 = vmatpush1.bf16.msra.mxu0 0
    %626 = vmatprep.subr.bf16.mxu0 0
    %627 = vmatpush1.bf16.msra.mxu0 0
    %628 = vmatprep.mubr.bf16.mxu0 0
    %629 = vmatmul.mubr.bf16.gmra.mrb[0].mxu0 %v543
    %v630 = vpop.f32.mrb[0].mxu0
    %v631 = vadd.f32 0.0, %v630
    %v632 = vpop.f32.mrb[0].mxu0
    %v633 = vpop.f32.mrb[0].mxu0
    %v634 = vadd.f32 0.0, %v633
    %v635 = vpop.f32.mrb[0].mxu0
    %636 = vmatprep.mubr.bf16.mxu0 0
    %637 = vmatmul.mubr.bf16.gmra.mrb[0].mxu0 %v544
    %v638 = vpop.f32.mrb[0].mxu0
    %v639 = vadd.f32 0.0, %v638
    %v640 = vpop.f32.mrb[0].mxu0
    %v641 = vpop.f32.mrb[0].mxu0
    %v642 = vadd.f32 0.0, %v641
    %v643 = vpop.f32.mrb[0].mxu0
    %644 = vdwg.mxu0
    %v645 = vmul.f32 %v521, %v582
    %v646 = vmul.f32 %v524, %v585
    %v647 = vmul.f32 %v529, %v590
    %v648 = vmul.f32 %v532, %v593
    %v649 = vadd.f32 %v645, %v646
    %v650 = vadd.f32 %v649, %v647
    %v651 = vadd.f32 %v650, %v648
    %v652 = vrot.slane %v651, 4
    %v653 = vadd.f32 %v651, %v652
    %v654 = vrot.slane %v653, 2
    %v655 = vadd.f32 %v653, %v654
    %v656 = vrot.slane %v655, 1
    %v657 = vadd.f32 %v655, %v656
    %v658 = vmul.f32 %v521, %v631
    %v659 = vmul.f32 %v524, %v634
    %v660 = vmul.f32 %v529, %v639
    %v661 = vmul.f32 %v532, %v642
    %v662 = vadd.f32 %v658, %v659
    %v663 = vadd.f32 %v662, %v660
    %v664 = vadd.f32 %v663, %v661
    %v665 = vrot.slane %v664, 4
    %v666 = vadd.f32 %v664, %v665
    %v667 = vrot.slane %v666, 2
    %v668 = vadd.f32 %v666, %v667
    %v669 = vrot.slane %v668, 1
    %v670 = vadd.f32 %v668, %v669
    %v671 = vmin.f32 %v657, 0.0
    %v672 = vand.u32 2147483647, %v657
    %v673 = vsub.f32 0.0, %v672
    %v674 = vmul.f32 %v673, 1.442695
    %v675 = vpow.pop %v674
    %v676 = vadd.f32 %v675, 1.0
    %v677 = vlog2.pop %v676
    %v678 = vmul.f32 %v677, 0.6931472
    %v679 = vmul.f32 -0.5, %v675
    %v680 = vadd.f32 %v679, 1.0
    %v681 = vmul.f32 %v680, %v675
    %v682 = vand.u32 2147483647, %v675
    %vm683 = vcmp.lt.f32.partialorder %v682, 0.0004427343
    %v684 = vsel %vm683, %v681, %v678
    %v685 = vsub.f32 %v671, %v684
    %v686 = vmin.f32 %v670, 0.0
    %v687 = vand.u32 2147483647, %v670
    %v688 = vsub.f32 0.0, %v687
    %v689 = vmul.f32 %v688, 1.442695
    %v690 = vpow.pop %v689
    %v691 = vadd.f32 %v690, 1.0
    %v692 = vlog2.pop %v691
    %v693 = vmul.f32 %v692, 0.6931472
    %v694 = vmul.f32 -0.5, %v690
    %v695 = vadd.f32 %v694, 1.0
    %v696 = vmul.f32 %v695, %v690
    %v697 = vand.u32 2147483647, %v690
    %vm698 = vcmp.lt.f32.partialorder %v697, 0.0004427343
    %v699 = vsel %vm698, %v696, %v693
    %v700 = vsub.f32 %v686, %v699
    %v701 = vadd.f32 %v685, %v700
    %s702 = sadd.s32 0, 0
    %s703 = smul.u32 %s702, 128
    %v704 = vlaneseq
    %v705 = vand.u32 %v704, 127
    %v706 = vstv %s703
    %v707 = vadd.s32 %v706, %v705
    %vm708 = vcmp.lt.s32.totalorder %v707, 16
    %v709 = vsel %vm708, %v701, 0.0
    %v710 = vld [vmem:[#allocation8] sm:$0xff]
    %711 = vadd.xlane.f32.xlu0 %v709
    %v712 = vpop.xlane.xlu0 %711
    %v713 = vadd.f32 %v710, %v712
    %714 = vst [vmem:[#allocation8] sm:$0xff] %v713
    // Predicated region
    $region30: #{tpu_custom_call.1} parent=1 // pred_check
      _
    $region31: #{tpu_custom_call.1} parent=1 // pred_check_branch
      %716 = sbr.rel (0) target = $region33
    $region32: #{tpu_custom_call.1} parent=1 // pred_region
      %s718 = ssub.s32 128, 128
      %719 = vsyncadd [#allocation4], %s718
      %s721 = sshll.u32 [#allocation8], 4
      %s722 = int_to_ptr.vmem [resolvable:$true] %s721
      %724 = dma.vmem_to_hbm [thread:$0]  %s722, 128, %s3, [#allocation4]
    $region33: #{tpu_custom_call.1} parent=1 // pred_fallthru
      _
    // Predicated region
    $region34: #{tpu_custom_call.1} parent=1 // pred_check
      _
    $region35: #{tpu_custom_call.1} parent=1 // pred_check_branch
      %726 = sbr.rel (0) target = $region37
    $region36: #{tpu_custom_call.1} parent=1 // pred_region
      %727 = dma.done [#allocation4], 128
    $region37: #{tpu_custom_call.1} parent=1 // pred_fallthru
      _
    %728 = vsyncpa [#allocation3], 1
    %729 = vsyncpa [#allocation6], 1
    %730 = vsyncpa [#allocation4], 1

</llo_original>
